<compile_context>
chip_gen: v7x
topology: tpu7x:2x2x1
jax: 0.10.0
libtpu: 0.0.40
codegen_flags: <defaults>
</compile_context>

<pallas_src>
import functools

import jax
import jax.numpy as jnp
from jax.experimental import pallas as pl
from jax.experimental.pallas import tpu as pltpu

_EPS = 1e-6
_MAX_TILE_B = 8192


def _gen_aware_budget():
    """Return (per-input block byte budget, vmem_limit_bytes) for this TPU gen."""
    try:
        info = pltpu.get_tpu_info()
        vmem_phys = getattr(info, "vmem_capacity_bytes", 64 << 20)
    except Exception:  # pragma: no cover - conservative fallback off-TPU
        vmem_phys = 64 << 20
    if vmem_phys <= (64 << 20):
        # v7x: 64 MiB physical VMEM. 2 inputs x 2 buffers x 6 MiB = 24 MiB of
        # block buffers; cap the limit well below physical for Mosaic headroom.
        return 6 << 20, 40 << 20
    # v5e / v6e: 128 MiB physical. Explicitly raise the scoped-VMEM limit so
    # larger blocks (2 x 2 x 8 MiB = 32 MiB) are legal on both generations.
    return 8 << 20, 48 << 20


def _choose_tile_b(batch, feat, itemsize, block_bytes, tile_b=None):
    """Pick a batch-tile size: sublane-aligned for the dtype, VMEM-friendly."""
    sublane_mult = 8 * max(1, 4 // max(itemsize, 1))  # 8 f32, 16 bf16, 32 int8
    if tile_b is None:
        tile_b = block_bytes // max(feat * itemsize, 1)
        tile_b = min(tile_b, _MAX_TILE_B)
    if tile_b >= batch:
        return batch  # single full-batch block (equal-to-full-dim is legal)
    tile_b = max(sublane_mult, (tile_b // sublane_mult) * sublane_mult)
    return tile_b


def _cos_loss_kernel(pred_ref, text_ref, out_ref, *, batch, tile_b, ragged):
    # Compute in f32 for numerical parity with PyTorch.
    p = pred_ref[...].astype(jnp.float32)
    t = text_ref[...].astype(jnp.float32)

    # Row-wise reductions over the feature axis (dim=1), kept 2-D.
    dot = jnp.sum(p * t, axis=1, keepdims=True)   # (tile_b, 1)
    pp = jnp.sum(p * p, axis=1, keepdims=True)    # (tile_b, 1)
    tt = jnp.sum(t * t, axis=1, keepdims=True)    # (tile_b, 1)

    # dot / max(||p||*||t||, eps)  ==  dot * rsqrt(max(pp*tt, eps^2))
    inv_denom = jax.lax.rsqrt(jnp.maximum(pp * tt, jnp.float32(_EPS * _EPS)))
    contrib = 1.0 - dot * inv_denom               # (tile_b, 1)

    if ragged:
        # Mask rows past the true batch size (ragged last tile only).
        i = pl.program_id(0)
        row = jax.lax.broadcasted_iota(jnp.int32, (tile_b, 1), 0) + i * tile_b
        contrib = jnp.where(row < batch, contrib, 0.0)

    # Per-tile partial sum of (1 - cos); one (1,1,1) block per grid step.
    out_ref[0] = jnp.sum(contrib, axis=0, keepdims=True)


def cos_loss(prediction, text_feature, *, tile_b=None):
    """Cosine loss: mean(1 - cosine_similarity(prediction, text_feature, dim=1)).

    prediction, text_feature: (B, D) arrays.  Returns a scalar f32.
    """
    assert prediction.shape == text_feature.shape
    B, D = prediction.shape
    itemsize = jnp.dtype(prediction.dtype).itemsize

    block_bytes, vmem_limit = _gen_aware_budget()
    tb = _choose_tile_b(B, D, itemsize, block_bytes, tile_b)
    num_tiles = pl.cdiv(B, tb)
    ragged = (B % tb) != 0

    kernel = functools.partial(
        _cos_loss_kernel, batch=B, tile_b=tb, ragged=ragged
    )

    cost = pl.CostEstimate(
        flops=8 * B * D,
        transcendentals=B,
        bytes_accessed=2 * B * D * itemsize + num_tiles * 4,
    )

    partials = pl.pallas_call(
        kernel,
        out_shape=jax.ShapeDtypeStruct((num_tiles, 1, 1), jnp.float32),
        grid_spec=pltpu.PrefetchScalarGridSpec(
            num_scalar_prefetch=0,
            grid=(num_tiles,),
            in_specs=[
                pl.BlockSpec((tb, D), lambda i: (i, 0)),
                pl.BlockSpec((tb, D), lambda i: (i, 0)),
            ],
            # Each grid step owns its own output block -> axis is parallel
            # (shards across both TensorCores on v7x).
            out_specs=pl.BlockSpec((1, 1, 1), lambda i: (i, 0, 0)),
        ),
        compiler_params=pltpu.CompilerParams(
            dimension_semantics=("parallel",),
            vmem_limit_bytes=vmem_limit,
        ),
        cost_estimate=cost,
    )(prediction, text_feature)

    # Final reduction over num_tiles partials is negligible; doing it in XLA
    # also gives pairwise-summation precision for very large B.
    return jnp.sum(partials) / jnp.float32(B)


def cos_loss_ref(prediction, text_feature):
    """Pure-JAX reference matching torch.nn.CosineSimilarity(dim=1, eps=1e-6)."""
    p = prediction.astype(jnp.float32)
    t = text_feature.astype(jnp.float32)
    dot = jnp.sum(p * t, axis=1)
    denom = jnp.maximum(
        jnp.linalg.norm(p, axis=1) * jnp.linalg.norm(t, axis=1), _EPS
    )
    return jnp.mean(1.0 - dot / denom)


if __name__ == "__main__":
    key = jax.random.PRNGKey(0)
    k1, k2, k3, k4, k5, k6 = jax.random.split(key, 6)

    # Case 1: small, lane-dense feature dim (CLIP-style 512-d text features).
    B, D = 16, 512
    prediction = jax.random.normal(k1, (B, D), dtype=jnp.float32)
    text_feature = jax.random.normal(k2, (B, D), dtype=jnp.float32)

    loss = jax.block_until_ready(cos_loss(prediction, text_feature))
    ref = jax.block_until_ready(cos_loss_ref(prediction, text_feature))
    assert jnp.allclose(loss, ref, atol=1e-5, rtol=1e-5), (loss, ref)

    # Case 2: multi-tile parallel grid + ragged-last-tile masking.
    B2, D2 = 200, 384
    p2 = jax.random.normal(k3, (B2, D2), dtype=jnp.float32)
    t2 = jax.random.normal(k4, (B2, D2), dtype=jnp.float32)

    loss2 = jax.block_until_ready(cos_loss(p2, t2, tile_b=64))
    ref2 = jax.block_until_ready(cos_loss_ref(p2, t2))
    assert jnp.allclose(loss2, ref2, atol=1e-5, rtol=1e-5), (loss2, ref2)

    # Case 3: bf16 inputs exercise the dtype-aware tile sizing (16-row sublanes).
    B3, D3 = 48, 256
    p3 = jax.random.normal(k5, (B3, D3), dtype=jnp.bfloat16)
    t3 = jax.random.normal(k6, (B3, D3), dtype=jnp.bfloat16)

    loss3 = jax.block_until_ready(cos_loss(p3, t3, tile_b=16))
    ref3 = jax.block_until_ready(cos_loss_ref(p3, t3))
    assert jnp.allclose(loss3, ref3, atol=1e-4, rtol=1e-4), (loss3, ref3)

    print("KERNEL_OK")
</pallas_src>

<mosaic_0001>
module attributes {stable_mosaic.version = 11 : i64} {
  func.func @_cos_loss_kernel(%arg0: i32, %arg1: memref<16x512xf32, #tpu.memory_space<vmem>>, %arg2: memref<16x512xf32, #tpu.memory_space<vmem>>, %arg3: memref<1x1x1xf32, #tpu.memory_space<vmem>>) attributes {dimension_semantics = [#tpu.dimension_semantics<parallel>], iteration_bounds = array<i64: 1>, scalar_prefetch = 0 : i64, scratch_operands = 0 : i64, tpu.core_type = #tpu.core_type<tc>, window_params = [{transform_indices = @transform_0, window_bounds = array<i64: 16, 512>}, {transform_indices = @transform_1, window_bounds = array<i64: 16, 512>}, {transform_indices = @transform_2, window_bounds = array<i64: 1, 1, 1>}]} {
    %c0 = arith.constant 0 : index
    %c0_0 = arith.constant 0 : index
    %0 = vector.load %arg1[%c0, %c0_0] : memref<16x512xf32, #tpu.memory_space<vmem>>, vector<16x512xf32>
    %c0_1 = arith.constant 0 : index
    %c0_2 = arith.constant 0 : index
    %1 = vector.load %arg2[%c0_1, %c0_2] : memref<16x512xf32, #tpu.memory_space<vmem>>, vector<16x512xf32>
    %2 = arith.mulf %0, %1 : vector<16x512xf32>
    %cst = arith.constant dense<0.000000e+00> : vector<16xf32>
    %3 = vector.multi_reduction <add>, %2, %cst [1] : vector<16x512xf32> to vector<16xf32>
    %4 = vector.shape_cast %3 : vector<16xf32> to vector<16x1xf32>
    %5 = arith.mulf %0, %0 : vector<16x512xf32>
    %cst_3 = arith.constant dense<0.000000e+00> : vector<16xf32>
    %6 = vector.multi_reduction <add>, %5, %cst_3 [1] : vector<16x512xf32> to vector<16xf32>
    %7 = vector.shape_cast %6 : vector<16xf32> to vector<16x1xf32>
    %8 = arith.mulf %1, %1 : vector<16x512xf32>
    %cst_4 = arith.constant dense<0.000000e+00> : vector<16xf32>
    %9 = vector.multi_reduction <add>, %8, %cst_4 [1] : vector<16x512xf32> to vector<16xf32>
    %10 = vector.shape_cast %9 : vector<16xf32> to vector<16x1xf32>
    %11 = arith.mulf %7, %10 : vector<16x1xf32>
    %cst_5 = arith.constant 9.99999996E-13 : f32
    %12 = vector.broadcast %cst_5 : f32 to vector<16x1xf32>
    %13 = arith.maximumf %11, %12 : vector<16x1xf32>
    %14 = math.rsqrt %13 : vector<16x1xf32>
    %15 = arith.mulf %4, %14 : vector<16x1xf32>
    %cst_6 = arith.constant 1.000000e+00 : f32
    %16 = vector.broadcast %cst_6 : f32 to vector<16x1xf32>
    %17 = arith.subf %16, %15 : vector<16x1xf32>
    %cst_7 = arith.constant dense<0.000000e+00> : vector<1xf32>
    %18 = vector.multi_reduction <add>, %17, %cst_7 [0] : vector<16x1xf32> to vector<1xf32>
    %19 = vector.shape_cast %18 : vector<1xf32> to vector<1x1xf32>
    %c0_8 = arith.constant 0 : index
    %c0_9 = arith.constant 0 : index
    %c0_10 = arith.constant 0 : index
    %20 = vector.load %arg3[%c0_8, %c0_9, %c0_10] : memref<1x1x1xf32, #tpu.memory_space<vmem>>, vector<1x1x1xf32>
    %21 = vector.shape_cast %20 : vector<1x1x1xf32> to vector<1x1xf32>
    %22 = vector.shape_cast %19 : vector<1x1xf32> to vector<1x1x1xf32>
    tpu.vector_store %arg3[%c0_8, %c0_9, %c0_10], %22 {strides = array<i32>} : memref<1x1x1xf32, #tpu.memory_space<vmem>>, vector<1x1x1xf32>,
    return
  }
  func.func @transform_0(%arg0: i32) -> (i32, i32) {
    %c0_i32 = arith.constant 0 : i32
    %c0_i32_0 = arith.constant 0 : i32
    return %arg0, %c0_i32 : i32, i32
  }
  func.func @transform_1(%arg0: i32) -> (i32, i32) {
    %c0_i32 = arith.constant 0 : i32
    %c0_i32_0 = arith.constant 0 : i32
    return %arg0, %c0_i32 : i32, i32
  }
  func.func @transform_2(%arg0: i32) -> (i32, i32, i32) {
    %c0_i32 = arith.constant 0 : i32
    %c0_i32_0 = arith.constant 0 : i32
    %c0_i32_1 = arith.constant 0 : i32
    return %arg0, %c0_i32, %c0_i32_0 : i32, i32, i32
  }
}

</mosaic_0001>

<llo_original>
// kernel: tpu_custom_call.1
$region0: #{tpu_custom_call.1}
  #allocation0 [shape = 'u32[]', space=smem, size = 0x4, offset = 0x4, fixed_abs, tag = 'smem constant byte address 0x4 - core index']
  #allocation1 [shape = 'u32[144,128]{1,0:T(1,128)}', space=vmem, size = 0x12000, scoped, tag = 'internal scratch']
  %s0 = inlined_call_operand.hbm [shape: f32[16,512], index: 0, kind: input, shape index: {}]
  %s1 = inlined_call_operand.hbm [shape: f32[16,512], index: 1, kind: input, shape index: {}]
  %s2 = inlined_call_operand.hbm [shape: f32[1,1,1], index: 2, kind: output, shape index: {}]
  %s3 = sld [smem:[#allocation0]]
  $region26: #{tpu_custom_call.1} parent=0
    _
  %s5 = ssub.s32 1, %s3
  %s6 = scalar_select 0, %s5, %s3
  $region1: #{tpu_custom_call.1} parent=0
    #allocation2 [shape = 'u8[32768]{0}', space=vmem, size = 0x8000, scoped, tag = 'input window, operand 0, single buffered']
    #allocation3 [shape = 's32[1]{0}', space=sflag, size = 0x4, scoped, tag = 'scoped memory for tpu_custom_call.1']
    #allocation4 [shape = 's32[1]{0}', space=sflag, size = 0x4, scoped, tag = 'scoped memory for tpu_custom_call.1']
    #allocation5 [shape = 'u8[32768]{0}', space=vmem, size = 0x8000, scoped, tag = 'input window, operand 1, single buffered']
    #allocation6 [shape = 's32[1]{0}', space=sflag, size = 0x4, scoped, tag = 'scoped memory for tpu_custom_call.1']
    #allocation7 [shape = 'u8[512]{0}', space=vmem, size = 0x400, scoped, tag = 'output window, operand 0, single buffered']
    %7 = vsyncpa [#allocation3], 0
    %8 = vsyncpa [#allocation6], 0
    %9 = vsyncpa [#allocation4], 0
    // Predicated region
    $region2: #{tpu_custom_call.1} parent=1 // pred_check
      _
    $region3: #{tpu_custom_call.1} parent=1 // pred_check_branch
      %11 = sbr.rel (0) target = $region5
    $region4: #{tpu_custom_call.1} parent=1 // pred_region
      %s13 = ssub.s32 1024, 1024
      %14 = vsyncadd [#allocation3], %s13
      %s15 = sshll.u32 [#allocation2], 4
      %s16 = int_to_ptr.vmem [resolvable:$true] %s15
      %21 = dma.hbm_to_vmem [thread:$0]  %s0, 1024, %s16, [#allocation3], 512, 512, 32
    $region5: #{tpu_custom_call.1} parent=1 // pred_fallthru
      _
    // Predicated region
    $region6: #{tpu_custom_call.1} parent=1 // pred_check
      _
    $region7: #{tpu_custom_call.1} parent=1 // pred_check_branch
      %23 = sbr.rel (0) target = $region9
    $region8: #{tpu_custom_call.1} parent=1 // pred_region
      %s25 = ssub.s32 1024, 1024
      %26 = vsyncadd [#allocation6], %s25
      %s27 = sshll.u32 [#allocation5], 4
      %s28 = int_to_ptr.vmem [resolvable:$true] %s27
      %33 = dma.hbm_to_vmem [thread:$0]  %s1, 1024, %s28, [#allocation6], 512, 512, 32
    $region9: #{tpu_custom_call.1} parent=1 // pred_fallthru
      _
    // Predicated region
    $region10: #{tpu_custom_call.1} parent=1 // pred_check
      _
    $region11: #{tpu_custom_call.1} parent=1 // pred_check_branch
      %35 = sbr.rel (0) target = $region13
    $region12: #{tpu_custom_call.1} parent=1 // pred_region
      %36 = dma.done [#allocation3], 1024
    $region13: #{tpu_custom_call.1} parent=1 // pred_fallthru
      _
    // Predicated region
    $region14: #{tpu_custom_call.1} parent=1 // pred_check
      _
    $region15: #{tpu_custom_call.1} parent=1 // pred_check_branch
      %38 = sbr.rel (0) target = $region17
    $region16: #{tpu_custom_call.1} parent=1 // pred_region
      %39 = dma.done [#allocation6], 1024
    $region17: #{tpu_custom_call.1} parent=1 // pred_fallthru
      _
    %v40 = vld [vmem:[#allocation2] sm:$0xff]
    %v41 = vld [vmem:[#allocation2 + $0x8] sm:$0xff]
    %v42 = vld [vmem:[#allocation2 + $0x10] sm:$0xff]
    %v43 = vld [vmem:[#allocation2 + $0x18] sm:$0xff]
    %v44 = vld [vmem:[#allocation2 + $0x20] sm:$0xff]
    %v45 = vld [vmem:[#allocation2 + $0x28] sm:$0xff]
    %v46 = vld [vmem:[#allocation2 + $0x30] sm:$0xff]
    %v47 = vld [vmem:[#allocation2 + $0x38] sm:$0xff]
    %v48 = vld [vmem:[#allocation5] sm:$0xff]
    %v49 = vld [vmem:[#allocation5 + $0x8] sm:$0xff]
    %v50 = vld [vmem:[#allocation5 + $0x10] sm:$0xff]
    %v51 = vld [vmem:[#allocation5 + $0x18] sm:$0xff]
    %v52 = vld [vmem:[#allocation5 + $0x20] sm:$0xff]
    %v53 = vld [vmem:[#allocation5 + $0x28] sm:$0xff]
    %v54 = vld [vmem:[#allocation5 + $0x30] sm:$0xff]
    %v55 = vld [vmem:[#allocation5 + $0x38] sm:$0xff]
    %v56 = vmul.f32 %v40, %v48
    %v57 = vmul.f32 %v41, %v49
    %v58 = vmul.f32 %v42, %v50
    %v59 = vmul.f32 %v43, %v51
    %v60 = vmul.f32 %v44, %v52
    %v61 = vmul.f32 %v45, %v53
    %v62 = vmul.f32 %v46, %v54
    %v63 = vmul.f32 %v47, %v55
    %v64 = vadd.f32 %v56, %v57
    %v65 = vadd.f32 %v64, %v58
    %v66 = vadd.f32 %v65, %v59
    %67 = vadd.xlane.f32.xlu0 %v66
    %v68 = vpop.xlane.xlu0 %67
    %v69 = vadd.f32 %v60, %v61
    %v70 = vadd.f32 %v69, %v62
    %v71 = vadd.f32 %v70, %v63
    %72 = vadd.xlane.f32.xlu0 %v71
    %v73 = vpop.xlane.xlu0 %72
    %v74 = vmul.f32 %v40, %v40
    %v75 = vmul.f32 %v41, %v41
    %v76 = vmul.f32 %v42, %v42
    %v77 = vmul.f32 %v43, %v43
    %v78 = vmul.f32 %v44, %v44
    %v79 = vmul.f32 %v45, %v45
    %v80 = vmul.f32 %v46, %v46
    %v81 = vmul.f32 %v47, %v47
    %v82 = vadd.f32 %v74, %v75
    %v83 = vadd.f32 %v82, %v76
    %v84 = vadd.f32 %v83, %v77
    %85 = vadd.xlane.f32.xlu0 %v84
    %v86 = vpop.xlane.xlu0 %85
    %v87 = vadd.f32 %v78, %v79
    %v88 = vadd.f32 %v87, %v80
    %v89 = vadd.f32 %v88, %v81
    %90 = vadd.xlane.f32.xlu0 %v89
    %v91 = vpop.xlane.xlu0 %90
    %v92 = vmul.f32 %v48, %v48
    %v93 = vmul.f32 %v49, %v49
    %v94 = vmul.f32 %v50, %v50
    %v95 = vmul.f32 %v51, %v51
    %v96 = vmul.f32 %v52, %v52
    %v97 = vmul.f32 %v53, %v53
    %v98 = vmul.f32 %v54, %v54
    %v99 = vmul.f32 %v55, %v55
    %v100 = vadd.f32 %v92, %v93
    %v101 = vadd.f32 %v100, %v94
    %v102 = vadd.f32 %v101, %v95
    %103 = vadd.xlane.f32.xlu0 %v102
    %v104 = vpop.xlane.xlu0 %103
    %v105 = vadd.f32 %v96, %v97
    %v106 = vadd.f32 %v105, %v98
    %v107 = vadd.f32 %v106, %v99
    %108 = vadd.xlane.f32.xlu0 %v107
    %v109 = vpop.xlane.xlu0 %108
    %v110 = vmul.f32 %v86, %v104
    %v111 = vmul.f32 %v91, %v109
    %v112 = vmax.f32 %v110, 1e-12
    %v113 = vmax.f32 %v111, 1e-12
    %v114 = vrsqrt.pop %v112
    %v115 = vrsqrt.pop %v113
    %v116 = vmul.f32 %v68, %v114
    %v117 = vmul.f32 %v73, %v115
    %v118 = vsub.f32 1.0, %v116
    %v119 = vsub.f32 1.0, %v117
    %v120 = vadd.f32 %v118, %v119
    %v121 = vrot.slane %v120, 4
    %v122 = vadd.f32 %v120, %v121
    %v123 = vrot.slane %v122, 2
    %v124 = vadd.f32 %v122, %v123
    %v125 = vrot.slane %v124, 1
    %v126 = vadd.f32 %v124, %v125
    %vm127 = vcmask 0
    %128 = vst.msk [vmem:[#allocation7] sm:$0x1] %vm127, %v126
    // Predicated region
    $region18: #{tpu_custom_call.1} parent=1 // pred_check
      _
    $region19: #{tpu_custom_call.1} parent=1 // pred_check_branch
      %130 = sbr.rel (0) target = $region21
    $region20: #{tpu_custom_call.1} parent=1 // pred_region
      %s132 = ssub.s32 16, 16
      %133 = vsyncadd [#allocation4], %s132
      %s135 = sshll.u32 [#allocation7], 4
      %s136 = int_to_ptr.vmem [resolvable:$true] %s135
      %138 = dma.vmem_to_hbm [thread:$0]  %s136, 16, %s2, [#allocation4]
    $region21: #{tpu_custom_call.1} parent=1 // pred_fallthru
      _
    // Predicated region
    $region22: #{tpu_custom_call.1} parent=1 // pred_check
      _
    $region23: #{tpu_custom_call.1} parent=1 // pred_check_branch
      %140 = sbr.rel (0) target = $region25
    $region24: #{tpu_custom_call.1} parent=1 // pred_region
      %141 = dma.done [#allocation4], 16
    $region25: #{tpu_custom_call.1} parent=1 // pred_fallthru
      _
    %142 = vsyncpa [#allocation3], 1
    %143 = vsyncpa [#allocation6], 1
    %144 = vsyncpa [#allocation4], 1

</llo_original>
